<compile_context>
chip_gen: v5e
topology: v5e:2x2
jax: 0.10.0
libtpu: 0.0.40
codegen_flags: <defaults>
</compile_context>

<pallas_src>
import math

import jax
import jax.numpy as jnp
from jax.experimental import pallas as pl
from jax.experimental.pallas import tpu as pltpu


def _round_up(x, m):
    return ((x + m - 1) // m) * m


def _classification_kernel(x_ref, w_ref, b_ref, o_ref):
    # x_ref: [TILE_N, E]   w_ref: [E, C]   b_ref: [1, C] (f32)   o_ref: [TILE_N, C]
    # MXU matmul in the operands' native dtype with f32 accumulation; the
    # weight is already in canonical [E, C] layout so no in-kernel transpose.
    logits = jnp.dot(x_ref[...], w_ref[...], preferred_element_type=jnp.float32)
    logits = logits + b_ref[...]  # bias already f32

    # Numerically-stable log_softmax along the class axis, all in f32.
    m = jnp.max(logits, axis=-1, keepdims=True)
    shifted = logits - m
    lse = jnp.log(jnp.sum(jnp.exp(shifted), axis=-1, keepdims=True))
    o_ref[...] = (shifted - lse).astype(o_ref.dtype)


def _vmem_capacity_bytes():
    # Generation-aware VMEM capacity (v7x: 64 MiB/TC, v5e/v6e: 128 MiB).
    try:
        return int(pltpu.get_tpu_info().vmem_capacity_bytes)
    except Exception:
        return 64 << 20  # conservative lower bound (v7x) if the query fails


def classification_forward(embeds, weight, bias, *, tile_n=None, stream_dtype=None):
    """log_softmax(embeds @ weight.T + bias, axis=1).

    embeds: [N, E]; weight: [C, E] (PyTorch nn.Linear layout); bias: [C].
    stream_dtype: optional opt-in (e.g. jnp.bfloat16) cast of the streamed
    embeds to cut HBM bandwidth (matters most on v5e).  Softmax math stays in
    f32 and the output keeps embeds' original dtype; expect ~bf16-level
    precision on the logits when enabled.
    """
    n, e = embeds.shape
    c = weight.shape[0]
    out_dtype = embeds.dtype

    if stream_dtype is not None:
        embeds = embeds.astype(stream_dtype)
    in_dtype = embeds.dtype
    in_isz = jnp.dtype(in_dtype).itemsize
    out_isz = jnp.dtype(out_dtype).itemsize

    # Canonical MXU layout: E on sublanes, C on lanes.  One tiny wrapper-side
    # transpose; the weight then stays VMEM-resident across all grid steps.
    w_t = weight.astype(in_dtype).T                    # [E, C]
    b_row = bias.astype(jnp.float32).reshape(1, c)     # [1, C]

    # ---- row-tile selection --------------------------------------------------
    row_align = 16 if in_isz < 4 else 8                # bf16 packs sublane pairs
    c_lane = _round_up(c, 128)                         # VMEM lane padding (estimate)
    vmem_cap = _vmem_capacity_bytes()
    budget = int(vmem_cap * 0.5)                       # headroom for temps/pipeline
    # Per-row VMEM: double-buffered input + output tiles plus f32 temporaries.
    per_row = 2 * e * in_isz + 2 * c_lane * out_isz + 3 * c_lane * 4
    resident = 2 * e * c_lane * in_isz + 2 * c_lane * 4
    max_rows = max(row_align, (budget - resident) // max(per_row, 1))

    if tile_n is None:
        tile_n = 8192                                  # amortize ~0.35us/step overhead
    tile_n = max(row_align, min(tile_n, max_rows, _round_up(n, row_align)))
    tile_n = _round_up(tile_n, row_align)

    # Rebalance into >= 2 roughly equal steps when possible so v7x's two
    # TensorCores both get work (no-op on single-TC v5e/v6e).
    num_steps = pl.cdiv(n, tile_n)
    if n > row_align:
        num_steps = max(num_steps, 2)
    tile_n = max(row_align, _round_up(pl.cdiv(n, num_steps), row_align))
    grid = (pl.cdiv(n, tile_n),)                       # non-divisible edge OK

    # ---- VMEM limit (kept below physical capacity on every generation) -------
    vmem_need = tile_n * per_row + resident
    vmem_limit = int(min(vmem_cap * 0.9, max(2 * vmem_need, 32 << 20)))

    cost = pl.CostEstimate(
        flops=2 * n * e * c,
        transcendentals=n * c,
        bytes_accessed=n * e * in_isz + e * c * in_isz + c * 4 + n * c * out_isz,
    )

    return pl.pallas_call(
        _classification_kernel,
        out_shape=jax.ShapeDtypeStruct((n, c), out_dtype),
        grid_spec=pltpu.PrefetchScalarGridSpec(
            num_scalar_prefetch=0,
            grid=grid,
            in_specs=[
                pl.BlockSpec((tile_n, e), lambda i: (i, 0)),   # streamed rows
                pl.BlockSpec((e, c), lambda i: (0, 0)),        # resident weight
                pl.BlockSpec((1, c), lambda i: (0, 0)),        # resident bias
            ],
            out_specs=pl.BlockSpec((tile_n, c), lambda i: (i, 0)),  # narrow writeback
        ),
        compiler_params=pltpu.CompilerParams(
            dimension_semantics=("parallel",),   # independent rows -> both TCs on v7x
            vmem_limit_bytes=vmem_limit,
        ),
        cost_estimate=cost,
    )(embeds, w_t, b_row)


def _xavier_uniform(key, shape, dtype=jnp.float32):
    # nn.init.xavier_uniform_ on a [fan_out, fan_in] matrix.
    fan_out, fan_in = shape
    limit = math.sqrt(6.0 / (fan_in + fan_out))
    return jax.random.uniform(key, shape, dtype=dtype, minval=-limit, maxval=limit)


if __name__ == "__main__":
    key = jax.random.PRNGKey(0)

    def ref_forward(x, w, b):
        return jax.nn.log_softmax(x @ w.T + b, axis=1)

    # --- test 1: shapes matching the module, default tiling ------------------
    N, EMB_SIZE, NUM_CLASSES = 16, 32, 8
    k_x, k_w, k_b, key = jax.random.split(key, 4)
    embeds = jax.random.normal(k_x, (N, EMB_SIZE), dtype=jnp.float32)
    weight = _xavier_uniform(k_w, (NUM_CLASSES, EMB_SIZE))
    bound = 1.0 / math.sqrt(EMB_SIZE)
    bias = jax.random.uniform(k_b, (NUM_CLASSES,), jnp.float32, minval=-bound, maxval=bound)

    out = jax.block_until_ready(classification_forward(embeds, weight, bias))
    assert out.shape == (N, NUM_CLASSES)
    assert jnp.allclose(out, ref_forward(embeds, weight, bias), atol=1e-5, rtol=1e-5)

    # --- test 2: multi-step grid with a non-divisible row count --------------
    N2, E2, C2 = 600, 64, 10
    k_x2, k_w2, k_b2, key = jax.random.split(key, 4)
    embeds2 = jax.random.normal(k_x2, (N2, E2), dtype=jnp.float32)
    weight2 = _xavier_uniform(k_w2, (C2, E2))
    bound2 = 1.0 / math.sqrt(E2)
    bias2 = jax.random.uniform(k_b2, (C2,), jnp.float32, minval=-bound2, maxval=bound2)

    out2 = jax.block_until_ready(
        classification_forward(embeds2, weight2, bias2, tile_n=256)
    )
    assert out2.shape == (N2, C2)
    assert jnp.allclose(out2, ref_forward(embeds2, weight2, bias2), atol=1e-5, rtol=1e-5)

    # --- test 3: opt-in bf16 streaming path (f32 softmax math inside) --------
    out3 = jax.block_until_ready(
        classification_forward(embeds2, weight2, bias2, stream_dtype=jnp.bfloat16)
    )
    assert out3.shape == (N2, C2)
    assert jnp.allclose(out3, ref_forward(embeds2, weight2, bias2), atol=5e-2)

    print("KERNEL_OK")
</pallas_src>

<mosaic_0001>
module attributes {stable_mosaic.version = 11 : i64} {
  func.func @_classification_kernel(%arg0: i32, %arg1: memref<8x32xf32, #tpu.memory_space<vmem>>, %arg2: memref<32x8xf32, #tpu.memory_space<vmem>>, %arg3: memref<1x8xf32, #tpu.memory_space<vmem>>, %arg4: memref<8x8xf32, #tpu.memory_space<vmem>>) attributes {dimension_semantics = [#tpu.dimension_semantics<parallel>], iteration_bounds = array<i64: 2>, scalar_prefetch = 0 : i64, scratch_operands = 0 : i64, tpu.core_type = #tpu.core_type<tc>, window_params = [{transform_indices = @transform_0, window_bounds = array<i64: 8, 32>}, {pipeline_mode = #tpu.pipeline_mode<synchronous>, transform_indices = @transform_1, window_bounds = array<i64: 32, 8>}, {pipeline_mode = #tpu.pipeline_mode<synchronous>, transform_indices = @transform_2, window_bounds = array<i64: 1, 8>}, {transform_indices = @transform_3, window_bounds = array<i64: 8, 8>}]} {
    %c0 = arith.constant 0 : index
    %c0_0 = arith.constant 0 : index
    %0 = vector.load %arg1[%c0, %c0_0] : memref<8x32xf32, #tpu.memory_space<vmem>>, vector<8x32xf32>
    %c0_1 = arith.constant 0 : index
    %c0_2 = arith.constant 0 : index
    %1 = vector.load %arg2[%c0_1, %c0_2] : memref<32x8xf32, #tpu.memory_space<vmem>>, vector<32x8xf32>
    %cst = arith.constant dense<0.000000e+00> : vector<8x8xf32>
    %2 = tpu.matmul %0, %1, %cst {dimension_numbers = #tpu.dot_dimension_numbers<[1], [0], [0], [1], [0, 0, 1, 1], [], []>} : vector<8x32xf32>, vector<32x8xf32>, vector<8x8xf32> -> vector<8x8xf32>
    %c0_3 = arith.constant 0 : index
    %c0_4 = arith.constant 0 : index
    %3 = vector.load %arg3[%c0_3, %c0_4] : memref<1x8xf32, #tpu.memory_space<vmem>>, vector<1x8xf32>
    %4 = vector.broadcast %3 : vector<1x8xf32> to vector<8x8xf32>
    %5 = arith.addf %2, %4 : vector<8x8xf32>
    %cst_5 = arith.constant dense<0xFF800000> : vector<8xf32>
    %6 = vector.multi_reduction <maximumf>, %5, %cst_5 [1] : vector<8x8xf32> to vector<8xf32>
    %7 = vector.shape_cast %6 : vector<8xf32> to vector<8x1xf32>
    %8 = vector.broadcast %7 : vector<8x1xf32> to vector<8x8xf32>
    %9 = arith.subf %5, %8 : vector<8x8xf32>
    %10 = math.exp %9 : vector<8x8xf32>
    %cst_6 = arith.constant dense<0.000000e+00> : vector<8xf32>
    %11 = vector.multi_reduction <add>, %10, %cst_6 [1] : vector<8x8xf32> to vector<8xf32>
    %12 = vector.shape_cast %11 : vector<8xf32> to vector<8x1xf32>
    %13 = math.log %12 : vector<8x1xf32>
    %14 = vector.broadcast %13 : vector<8x1xf32> to vector<8x8xf32>
    %15 = arith.subf %9, %14 : vector<8x8xf32>
    %c0_7 = arith.constant 0 : index
    %c0_8 = arith.constant 0 : index
    %16 = vector.load %arg4[%c0_7, %c0_8] : memref<8x8xf32, #tpu.memory_space<vmem>>, vector<8x8xf32>
    tpu.vector_store %arg4[%c0_7, %c0_8], %15 {strides = array<i32>} : memref<8x8xf32, #tpu.memory_space<vmem>>, vector<8x8xf32>,
    return
  }
  func.func @transform_0(%arg0: i32) -> (i32, i32) {
    %c0_i32 = arith.constant 0 : i32
    %c0_i32_0 = arith.constant 0 : i32
    return %arg0, %c0_i32 : i32, i32
  }
  func.func @transform_1(%arg0: i32) -> (i32, i32) {
    %c0_i32 = arith.constant 0 : i32
    %c0_i32_0 = arith.constant 0 : i32
    %c0_i32_1 = arith.constant 0 : i32
    return %c0_i32, %c0_i32_0 : i32, i32
  }
  func.func @transform_2(%arg0: i32) -> (i32, i32) {
    %c0_i32 = arith.constant 0 : i32
    %c0_i32_0 = arith.constant 0 : i32
    %c0_i32_1 = arith.constant 0 : i32
    return %c0_i32, %c0_i32_0 : i32, i32
  }
  func.func @transform_3(%arg0: i32) -> (i32, i32) {
    %c0_i32 = arith.constant 0 : i32
    %c0_i32_0 = arith.constant 0 : i32
    return %arg0, %c0_i32 : i32, i32
  }
}

</mosaic_0001>

<llo_original>
// kernel: tpu_custom_call.1
$region0: #{tpu_custom_call.1}
  #allocation0 [shape = 'u32[]', space=smem, size = 0x4, offset = 0x4, fixed_abs, tag = 'smem constant byte address 0x4 - core index']
  #allocation1 [shape = 'u32[72,128]{1,0:T(1,128)}', space=vmem, size = 0x9000, scoped, tag = 'internal scratch']
  %s0 = inlined_call_operand.vmem [shape: f32[16,32], index: 0, kind: input, shape index: {}]
  %s1 = inlined_call_operand.vmem [shape: f32[32,8], index: 1, kind: input, shape index: {}]
  %s2 = inlined_call_operand.vmem [shape: f32[1,8], index: 2, kind: input, shape index: {}]
  %s3 = inlined_call_operand.vmem [shape: f32[16,8], index: 3, kind: output, shape index: {}]
  %s4 = sld [smem:[#allocation0]]
  $region45: #{tpu_custom_call.1} parent=0
    _
  %s6 = ssub.s32 1, %s4
  %s7 = scalar_select 0, %s6, %s4
  loop: start=0, step=1, limit=4
  $region2: #{tpu_custom_call.1} parent=0 // loop_pre_header
    _
  $region3: #{tpu_custom_call.1} parent=0 // loop_header
    %s9 = sphi 0, %s13
    %p10 = scmp.ge.s32.totalorder %s9, 4
    %s19 = sphi 0, %s21
    %s22 = sphi 0, %s19
    %s23 = sphi 0, %s22
    %s39 = sphi 0, %s23
    %s43 = sphi 0, %s43
    %s45 = sphi 0, %s43
    %s46 = sphi 0, %s45
    %s60 = sphi 0, %s46
    %s64 = sphi 0, %s64
    %s66 = sphi 0, %s64
    %s67 = sphi 0, %s66
    %s81 = sphi 0, %s67
    %s87 = sphi 0, %s89
    %s90 = sphi 0, %s87
    %s91 = sphi 0, %s90
    %s107 = sphi 0, %s91
  $region4: #{tpu_custom_call.1} parent=0 // loop_header_branch
    %12 = sbr.rel (%p10) target = $region8
  $region5: #{tpu_custom_call.1} parent=0 // loop_body
    %s14 = ssub.s32 %s9, 1
    %s15 = ssub.s32 %s9, 2
    %s16 = sadd.s32 %s9, 1
    %s17 = ssub.s32 %s9, %s16
    %p18 = scmp.eq.s32.totalorder %s17, 0
    %s20 = sadd.s32 %s19, 1
    %s21 = scalar_select %p18, %s19, %s20
    %p24 = pneg %p18
    %p25 = scmp.eq.s32.totalorder %s9, 1
    %p26 = por %p24, %p25
    %p27 = scmp.ne.s32.totalorder %s19, %s22
    %p28 = scmp.eq.s32.totalorder %s9, 0
    %p29 = por %p27, %p28
    %p30 = scmp.ne.s32.totalorder %s19, %s22
    %p31 = scmp.eq.s32.totalorder %s14, 1
    %p32 = por %p30, %p31
    %p33 = scmp.ne.s32.totalorder %s22, %s23
    %p34 = scmp.eq.s32.totalorder %s14, 0
    %p35 = por %p33, %p34
    %p36 = scmp.ne.s32.totalorder %s22, %s23
    %p37 = scmp.eq.s32.totalorder %s15, 1
    %p38 = por %p36, %p37
    %p40 = scmp.ne.s32.totalorder %s23, %s39
    %p41 = scmp.eq.s32.totalorder %s15, 0
    %p42 = por %p40, %p41
    %s44 = sadd.s32 %s43, 1
    %p47 = scmp.eq.s32.totalorder %s9, 1
    %p48 = scmp.ne.s32.totalorder %s43, %s45
    %p49 = scmp.eq.s32.totalorder %s9, 0
    %p50 = por %p48, %p49
    %p51 = scmp.ne.s32.totalorder %s43, %s45
    %p52 = scmp.eq.s32.totalorder %s14, 1
    %p53 = por %p51, %p52
    %p54 = scmp.ne.s32.totalorder %s45, %s46
    %p55 = scmp.eq.s32.totalorder %s14, 0
    %p56 = por %p54, %p55
    %p57 = scmp.ne.s32.totalorder %s45, %s46
    %p58 = scmp.eq.s32.totalorder %s15, 1
    %p59 = por %p57, %p58
    %p61 = scmp.ne.s32.totalorder %s46, %s60
    %p62 = scmp.eq.s32.totalorder %s15, 0
    %p63 = por %p61, %p62
    %s65 = sadd.s32 %s64, 1
    %p68 = scmp.eq.s32.totalorder %s9, 1
    %p69 = scmp.ne.s32.totalorder %s64, %s66
    %p70 = scmp.eq.s32.totalorder %s9, 0
    %p71 = por %p69, %p70
    %p72 = scmp.ne.s32.totalorder %s64, %s66
    %p73 = scmp.eq.s32.totalorder %s14, 1
    %p74 = por %p72, %p73
    %p75 = scmp.ne.s32.totalorder %s66, %s67
    %p76 = scmp.eq.s32.totalorder %s14, 0
    %p77 = por %p75, %p76
    %p78 = scmp.ne.s32.totalorder %s66, %s67
    %p79 = scmp.eq.s32.totalorder %s15, 1
    %p80 = por %p78, %p79
    %p82 = scmp.ne.s32.totalorder %s67, %s81
    %p83 = scmp.eq.s32.totalorder %s15, 0
    %p84 = por %p82, %p83
    %s85 = ssub.s32 %s9, %s16
    %p86 = scmp.eq.s32.totalorder %s85, 0
    %s88 = sadd.s32 %s87, 1
    %s89 = scalar_select %p86, %s87, %s88
    %p92 = pneg %p86
    %p93 = scmp.eq.s32.totalorder %s9, 1
    %p94 = por %p92, %p93
    %p95 = scmp.ne.s32.totalorder %s87, %s90
    %p96 = scmp.eq.s32.totalorder %s9, 0
    %p97 = por %p95, %p96
    %p98 = scmp.ne.s32.totalorder %s87, %s90
    %p99 = scmp.eq.s32.totalorder %s14, 1
    %p100 = por %p98, %p99
    %p101 = scmp.ne.s32.totalorder %s90, %s91
    %p102 = scmp.eq.s32.totalorder %s14, 0
    %p103 = por %p101, %p102
    %p104 = scmp.ne.s32.totalorder %s90, %s91
    %p105 = scmp.eq.s32.totalorder %s15, 1
    %p106 = por %p104, %p105
    %p108 = scmp.ne.s32.totalorder %s91, %s107
    %p109 = scmp.eq.s32.totalorder %s15, 0
    %p110 = por %p108, %p109
    %p111 = scmp.le.s32.totalorder 1, %s9
    %p112 = scmp.lt.s32.totalorder %s9, 3
    %p113 = pnand %p111, %p112
    %p114 = pneg %p113
    // Predicated region
    $region9: #{tpu_custom_call.1} parent=5 // pred_check
      _
    $region10: #{tpu_custom_call.1} parent=5 // pred_check_branch
      %116 = sbr.rel (%p113) target = $region12
    $region11: #{tpu_custom_call.1} parent=5 // pred_region
      %s117 = ssub.s32 %s9, 1
      // Predicated region
      $region13: #{tpu_custom_call.1} parent=11 // pred_check
        %p118 = pneg %p56
      $region14: #{tpu_custom_call.1} parent=11 // pred_check_branch
        %120 = sbr.rel (%p118) target = $region16
      $region15: #{tpu_custom_call.1} parent=11 // pred_region
        _
      $region16: #{tpu_custom_call.1} parent=11 // pred_fallthru
        _
      // Predicated region
      $region17: #{tpu_custom_call.1} parent=11 // pred_check
        %p121 = pneg %p77
      $region18: #{tpu_custom_call.1} parent=11 // pred_check_branch
        %123 = sbr.rel (%p121) target = $region20
      $region19: #{tpu_custom_call.1} parent=11 // pred_region
        _
      $region20: #{tpu_custom_call.1} parent=11 // pred_fallthru
        _
    $region12: #{tpu_custom_call.1} parent=5 // pred_fallthru
      _
    %p124 = scmp.lt.s32.totalorder %s9, 2
    // Predicated region
    $region21: #{tpu_custom_call.1} parent=5 // pred_check
      %p125 = pneg %p124
    $region22: #{tpu_custom_call.1} parent=5 // pred_check_branch
      %127 = sbr.rel (%p125) target = $region24
    $region23: #{tpu_custom_call.1} parent=5 // pred_region
      // Predicated region
      $region25: #{tpu_custom_call.1} parent=23 // pred_check
        %p128 = pneg %p29
      $region26: #{tpu_custom_call.1} parent=23 // pred_check_branch
        %130 = sbr.rel (%p128) target = $region28
      $region27: #{tpu_custom_call.1} parent=23 // pred_region
        %p131 = scmp.lt.s32.totalorder %s9, 1
        %s132 = scalar_select %p131, %s9, 1
        %s133 = smul.addr %s132, 8
        %s134 = scalar_lea.vmem %s0, %s133
      $region28: #{tpu_custom_call.1} parent=23 // pred_fallthru
        _
    $region24: #{tpu_custom_call.1} parent=5 // pred_fallthru
      _
    %p135 = scmp.le.s32.totalorder 1, %s9
    %p136 = scmp.lt.s32.totalorder %s9, 3
    %p137 = pnand %p135, %p136
    %p138 = pneg %p137
    // Predicated region
    $region29: #{tpu_custom_call.1} parent=5 // pred_check
      _
    $region30: #{tpu_custom_call.1} parent=5 // pred_check_branch
      %140 = sbr.rel (%p137) target = $region32
    $region31: #{tpu_custom_call.1} parent=5 // pred_region
      %s141 = ssub.s32 %s9, 1
      %p142 = scmp.lt.s32.totalorder %s14, 1
      %s143 = scalar_select %p142, %s14, 1
      %s144 = smul.addr %s143, 8
      %s145 = scalar_lea.vmem %s0, %s144
      %p146 = pneg %p35
      %p147 = pneg %p32
      %p148 = pneg %p56
      %p149 = pneg %p53
      %p150 = pneg %p77
      %p151 = pneg %p74
      %p152 = pneg %p103
      %p153 = pneg %p100
      %p154 = scmp.lt.s32.totalorder %s14, 1
      %s155 = scalar_select %p154, %s14, 1
      %s156 = smul.addr %s155, 8
      %s157 = scalar_lea.vmem %s3, %s156
      %p158 = scmp.lt.s32.totalorder %s14, 1
      %s159 = scalar_select %p158, %s14, 1
      %s160 = smul.addr %s159, 8
      %s161 = scalar_lea.vmem %s0, %s160
      %p162 = scmp.lt.s32.totalorder %s14, 1
      %s163 = scalar_select %p162, %s14, 1
      %s164 = smul.addr %s163, 8
      %s165 = scalar_lea.vmem %s3, %s164
      %v166 = vld [vmem:[%s161] sm:$0xff]
      %v167 = vld [vmem:[%s1] sm:$0xff]
      %v168 = vld [vmem:[%s1 + $0x8] sm:$0xff]
      %v169 = vld [vmem:[%s1 + $0x10] sm:$0xff]
      %v170 = vld [vmem:[%s1 + $0x18] sm:$0xff]
      %v171 = vld [vmem:[%s2] sm:$0x1]
      %v173 = vperm.slane %v171, 0
      %vm175 = vcmask 261120
      %v177 = vsel %vm175, %v166, 0
      %179 = vmatpush.msra.mxu0 0.0
      %180 = vmatpush.msra.mxu0 0.0
      %181 = vmatpush.msra.mxu0 0.0
      %182 = vmatpush.msra.mxu0 0.0
      %183 = vmatpush.msra.mxu0 0.0
      %184 = vmatpush.msra.mxu0 0.0
      %185 = vmatpush.msra.mxu0 0.0
      %186 = vmatpush.msra.mxu0 0.0
      %187 = vmatpush.msra.mxu0 0.0
      %188 = vmatpush.msra.mxu0 0.0
      %189 = vmatpush.msra.mxu0 0.0
      %190 = vmatpush.msra.mxu0 0.0
      %191 = vmatpush.msra.mxu0 %v170
      %192 = vmatpush.msra.mxu0 %v169
      %193 = vmatpush.msra.mxu0 %v168
      %194 = vmatpush.msra.mxu0 %v167
      %195 = vmatmul.f32.gmra.mxu0 %v177
      %v196 = vpop.f32.mrf.mxu0
      %v197 = vadd.f32 %v173, %v196
      %198 = vdwg.mxu0
      %vm199 = vcmask 64512
      %v200 = vsel %vm199, %v197, -inf
      %201 = vmax.xlane.f32.xlu0 %v200
      %v202 = vpop.xlane.xlu0 %201
      %v203 = vsub.f32 %v197, %v202
      %v204 = vmul.f32 %v203, 1.442695
      %v205 = vpow.pop %v204
      %v206 = vsel %vm199, %v205, 0.0
      %207 = vadd.xlane.f32.xlu0 %v206
      %v208 = vpop.xlane.xlu0 %207
      %v209 = vlog2.pop %v208
      %v210 = vmul.f32 %v209, 0.6931472
      %v211 = vsub.f32 %v203, %v210
      %212 = vst.msk [vmem:[%s165] sm:$0xff] %vm199, %v211
      %p213 = scmp.lt.s32.totalorder %s14, 1
      %s214 = scalar_select %p213, %s14, 1
      %s215 = smul.addr %s214, 8
      %s216 = scalar_lea.vmem %s3, %s215
      // Predicated region
      $region33: #{tpu_custom_call.1} parent=31 // pred_check
        %p217 = pneg %p100
      $region34: #{tpu_custom_call.1} parent=31 // pred_check_branch
        %219 = sbr.rel (%p217) target = $region36
      $region35: #{tpu_custom_call.1} parent=31 // pred_region
        _
      $region36: #{tpu_custom_call.1} parent=31 // pred_fallthru
        _
    $region32: #{tpu_custom_call.1} parent=5 // pred_fallthru
      _
    %p220 = scmp.le.s32.totalorder 2, %s9
    // Predicated region
    $region37: #{tpu_custom_call.1} parent=5 // pred_check
      %p221 = pneg %p220
    $region38: #{tpu_custom_call.1} parent=5 // pred_check_branch
      %223 = sbr.rel (%p221) target = $region40
    $region39: #{tpu_custom_call.1} parent=5 // pred_region
      %s224 = ssub.s32 %s9, 2
      // Predicated region
      $region41: #{tpu_custom_call.1} parent=39 // pred_check
        %p225 = pneg %p106
      $region42: #{tpu_custom_call.1} parent=39 // pred_check_branch
        %227 = sbr.rel (%p225) target = $region44
      $region43: #{tpu_custom_call.1} parent=39 // pred_region
        %p228 = scmp.lt.s32.totalorder %s15, 1
        %s229 = scalar_select %p228, %s15, 1
        %s230 = smul.addr %s229, 8
        %s231 = scalar_lea.vmem %s3, %s230
      $region44: #{tpu_custom_call.1} parent=39 // pred_fallthru
        _
    $region40: #{tpu_custom_call.1} parent=5 // pred_fallthru
      _
  $region6: #{tpu_custom_call.1} parent=0 // loop_footer
    %s13 = sadd.s32 1, %s9
  $region7: #{tpu_custom_call.1} parent=0 // loop_footer_branch
    %8 = sbr.rel target = $region3
  $region8: #{tpu_custom_call.1} parent=0 // loop_exit
    _

</llo_original>
